<compile_context>
chip_gen: v5e
topology: v5e:2x2
jax: 0.10.0
libtpu: 0.0.40
codegen_flags: <defaults>
</compile_context>

<pallas_src>
import jax
import jax.numpy as jnp
from jax.experimental import pallas as pl
from jax.experimental.pallas import tpu as pltpu

LANE = 128


def _round_up(x, m):
    return (x + m - 1) // m * m


def _sublane_for(dtype):
    # f32 -> 8 rows / vreg, bf16 -> 16, int8/fp8 -> 32.
    return max(8, 32 // jnp.dtype(dtype).itemsize)


# -----------------------------------------------------------------------------
# One-time parameter packing: pad to lane-dense (multiples of 128) shapes,
# concatenate every head's layer-0 along N, cast matmul operands to bf16.
# -----------------------------------------------------------------------------
def pack_hra_params(params, compute_dtype=jnp.bfloat16):
    """params: list (per head) of [(W, b), ...]; last pair is the q-layer.
    Returns (packed_list, meta). packed_list order must match the kernel:
      [W0_cat, b0_cat]                              (if any head has hidden layers)
      for l in 1..max_depth-1: for head with depth>l: W, b   (interleaved)
      for head: Wq, bq
    """
    n_heads = len(params)
    depths = tuple(len(head) - 1 for head in params)
    n_feat = params[0][0][0].shape[0]
    f_pad = _round_up(n_feat, LANE)

    packed = []

    # ---- layer 0 of every head, concatenated along N ------------------------
    l0_heads = tuple(h for h in range(n_heads) if depths[h] >= 1)
    has_l0 = len(l0_heads) > 0
    l0_seg_pads = []
    if has_l0:
        w_blocks, b_blocks = [], []
        for h in l0_heads:
            w, b = params[h][0]
            k, n = w.shape
            n_pad = _round_up(n, LANE)
            wp = jnp.zeros((f_pad, n_pad), jnp.float32).at[:k, :n].set(w)
            bp = jnp.zeros((1, n_pad), jnp.float32).at[:, :n].set(
                b.reshape(1, -1))
            w_blocks.append(wp)
            b_blocks.append(bp)
            l0_seg_pads.append(n_pad)
        packed.append(jnp.concatenate(w_blocks, axis=1).astype(compute_dtype))
        packed.append(jnp.concatenate(b_blocks, axis=1))          # bias f32

    # ---- hidden layers >= 1, interleaved across heads per depth level -------
    mid_ops = []
    max_depth = max(depths) if depths else 0
    for l in range(1, max_depth):
        for h in range(n_heads):
            if depths[h] > l:
                w, b = params[h][l]
                k, n = w.shape
                kp, np_ = _round_up(k, LANE), _round_up(n, LANE)
                wp = jnp.zeros((kp, np_), jnp.float32).at[:k, :n].set(w)
                bp = jnp.zeros((1, np_), jnp.float32).at[:, :n].set(
                    b.reshape(1, -1))
                packed.append(wp.astype(compute_dtype))
                packed.append(bp)
                mid_ops.append(h)

    # ---- q layers ------------------------------------------------------------
    out_dims, out_pads = [], []
    for h in range(n_heads):
        w, b = params[h][-1]
        k, n = w.shape
        kp, np_ = _round_up(k, LANE), _round_up(n, LANE)
        wp = jnp.zeros((kp, np_), jnp.float32).at[:k, :n].set(w)
        bp = jnp.zeros((1, np_), jnp.float32).at[:, :n].set(b.reshape(1, -1))
        packed.append(wp.astype(compute_dtype))
        packed.append(bp)
        out_dims.append(n)
        out_pads.append(np_)

    meta = dict(
        n_heads=n_heads,
        depths=depths,
        n_feat=n_feat,
        f_pad=f_pad,
        has_l0=has_l0,
        l0_heads=l0_heads,
        l0_seg_pads=tuple(l0_seg_pads),
        l0_width=sum(l0_seg_pads),
        mid_ops=tuple(mid_ops),
        out_dims=tuple(out_dims),
        out_pads=tuple(out_pads),
    )
    return packed, meta


# -----------------------------------------------------------------------------
# Fused kernel: all heads, all layers, single invocation.
# -----------------------------------------------------------------------------
def _make_fused_kernel(meta, compute_dtype):
    n_heads = meta["n_heads"]
    has_l0 = meta["has_l0"]
    l0_heads = meta["l0_heads"]
    l0_seg_pads = meta["l0_seg_pads"]
    mid_ops = meta["mid_ops"]
    out_pads = meta["out_pads"]

    def kernel(*refs):
        x_ref = refs[0]
        out_ref = refs[-1]
        params = refs[1:-1]
        idx = 0

        x = x_ref[...]                       # (tm, f_pad), compute_dtype
        h = [x] * n_heads                    # per-head current activation

        # ---- layer 0, all heads fused into one wide matmul ------------------
        if has_l0:
            w0 = params[idx][...]
            b0 = params[idx + 1][...]
            idx += 2
            a0 = jnp.dot(x, w0, preferred_element_type=jnp.float32) + b0
            a0 = jnp.maximum(a0, 0.0)        # ReLU (f32, VPU)
            off = 0
            for hi, seg in zip(l0_heads, l0_seg_pads):
                h[hi] = a0[:, off:off + seg]   # lane-aligned static slice
                off += seg

        # ---- hidden layers >= 1, heads interleaved per depth level ----------
        for hi in mid_ops:
            w = params[idx][...]
            b = params[idx + 1][...]
            idx += 2
            a = jnp.dot(h[hi].astype(compute_dtype), w,
                        preferred_element_type=jnp.float32) + b
            h[hi] = jnp.maximum(a, 0.0)

        # ---- q layers, independent heads back-to-back -----------------------
        off = 0
        for hi in range(n_heads):
            wq = params[idx][...]
            bq = params[idx + 1][...]
            idx += 2
            q = jnp.dot(h[hi].astype(compute_dtype), wq,
                        preferred_element_type=jnp.float32) + bq
            # full 128-lane-aligned, unmasked store segment
            out_ref[:, off:off + out_pads[hi]] = q.astype(out_ref.dtype)
            off += out_pads[hi]

    return kernel


# -----------------------------------------------------------------------------
# Forward builder: returns a jitted function f(x, packed) -> [q_head0, ...]
# -----------------------------------------------------------------------------
def build_hra_forward(meta, compute_dtype=jnp.bfloat16, out_dtype=jnp.float32,
                      block_m=512, single_buffer_weights=True):
    # out_dtype=jnp.bfloat16 halves store / HBM writeback traffic (useful on
    # v5e); default f32 keeps an exact bias-add result.
    sub = _sublane_for(compute_dtype)
    total_out = sum(meta["out_pads"])
    f_pad = meta["f_pad"]
    n_feat = meta["n_feat"]
    kernel = _make_fused_kernel(meta, compute_dtype)

    def forward(x, packed):
        batch = x.shape[0]
        x_flat = x.reshape(batch, -1)
        assert x_flat.shape[1] == n_feat

        # Batch tile: aim for >=2 grid steps when the batch allows, so the
        # "parallel" axis can shard across v7x's two TensorCores.
        tm = min(_round_up(block_m, sub),
                 max(sub, _round_up(pl.cdiv(batch, 2), sub)))

        # --- explicit VMEM budget (v7x has only 64 MiB/TC) -------------------
        cbytes = jnp.dtype(compute_dtype).itemsize
        obytes = jnp.dtype(out_dtype).itemsize
        param_bytes = sum(int(p.size) * jnp.dtype(p.dtype).itemsize
                          for p in packed)
        weight_buf = 1 if single_buffer_weights else 2

        def vmem_estimate(tm_):
            x_blk = tm_ * f_pad * cbytes
            out_blk = tm_ * total_out * obytes
            act = 4 * tm_ * (meta["l0_width"] + total_out)   # rough f32 live set
            return weight_buf * param_bytes + 2 * (x_blk + out_blk) + act

        VMEM_BUDGET = 48 * 1024 * 1024
        while tm > sub and vmem_estimate(tm) > VMEM_BUDGET:
            new_tm = max(sub, _round_up(tm // 2, sub))
            if new_tm == tm:
                break
            tm = new_tm
        # TODO(synk): if the resident weight set alone exceeds the budget,
        # stream weights over a head/layer grid axis (pltpu.emit_pipeline)
        # instead of keeping them fully resident.
        vmem_limit = int(min(64 * 1024 * 1024,
                             max(32 * 1024 * 1024, 1.25 * vmem_estimate(tm))))

        b_pad = _round_up(batch, tm)
        grid = (b_pad // tm,)

        x_p = jnp.zeros((b_pad, f_pad), compute_dtype)
        x_p = x_p.at[:batch, :n_feat].set(x_flat.astype(compute_dtype))

        x_spec = pl.BlockSpec((tm, f_pad), lambda i: (i, 0))
        use_buffered = single_buffer_weights and hasattr(pl, "Buffered")
        if use_buffered:
            # Weights / biases never change across the grid: single buffer.
            param_specs = [pl.BlockSpec(tuple(p.shape), lambda i: (0, 0),
                                        pipeline_mode=pl.Buffered(1))
                           for p in packed]
        else:
            param_specs = [pl.BlockSpec(tuple(p.shape), lambda i: (0, 0))
                           for p in packed]
        out_spec = pl.BlockSpec((tm, total_out), lambda i: (i, 0))

        flops = 0
        for p in packed:
            if p.ndim == 2 and p.shape[0] > 1:     # weight (not bias)
                flops += 2 * b_pad * int(p.shape[0]) * int(p.shape[1])
        bytes_accessed = (b_pad * f_pad * cbytes + param_bytes
                          + b_pad * total_out * obytes)

        out = pl.pallas_call(
            kernel,
            out_shape=jax.ShapeDtypeStruct((b_pad, total_out), out_dtype),
            grid=grid,
            in_specs=[x_spec] + param_specs,
            out_specs=out_spec,
            compiler_params=pltpu.CompilerParams(
                dimension_semantics=("parallel",),
                vmem_limit_bytes=vmem_limit),
            cost_estimate=pl.CostEstimate(flops=flops, transcendentals=0,
                                          bytes_accessed=bytes_accessed),
        )(x_p, *packed)

        q_values = []
        off = 0
        for od, op in zip(meta["out_dims"], meta["out_pads"]):
            q_values.append(out[:batch, off:off + od].astype(jnp.float32))
            off += op
        return q_values

    return jax.jit(forward)


# -----------------------------------------------------------------------------
# Plain-JAX references (PyTorch-equivalent semantics)
# -----------------------------------------------------------------------------
def hra_forward_ref(x, params, compute_dtype=jnp.float32):
    x_flat = x.reshape(x.shape[0], -1).astype(jnp.float32)
    outs = []
    for head in params:
        h = x_flat
        for w, b in head[:-1]:
            h = jnp.dot(h.astype(compute_dtype), w.astype(compute_dtype),
                        preferred_element_type=jnp.float32) + b
            h = jnp.maximum(h, 0.0)
        wq, bq = head[-1]
        outs.append(jnp.dot(h.astype(compute_dtype), wq.astype(compute_dtype),
                            preferred_element_type=jnp.float32) + bq)
    return outs


# -----------------------------------------------------------------------------
# Deterministic synthetic parameters (no checkpoint load)
# -----------------------------------------------------------------------------
def init_hra_params(key, input_shape, networks, output_dim):
    in_features_base = 1
    for d in input_shape:
        in_features_base *= d

    params = []
    for net in networks:
        head = []
        in_features = in_features_base
        for out_features in net["layers"]:
            key, kw, kb = jax.random.split(key, 3)
            w = 0.1 * jax.random.normal(kw, (in_features, out_features),
                                        jnp.float32)
            b = 0.1 * jax.random.normal(kb, (1, out_features), jnp.float32)
            head.append((w, b))
            in_features = out_features
        key, kw, kb = jax.random.split(key, 3)
        wq = 0.1 * jax.random.normal(kw, (in_features, output_dim),
                                     jnp.float32)
        bq = 0.1 * jax.random.normal(kb, (1, output_dim), jnp.float32)
        head.append((wq, bq))
        params.append(head)
    return params


# -----------------------------------------------------------------------------
# Main
# -----------------------------------------------------------------------------
if __name__ == "__main__":
    # Small synthetic network_config:
    #   input_shape = (4, 4)  -> 16 flattened features
    #   two heads: hidden layers [32, 32] and [16]
    #   output_shape = [8]    -> 8 q-values per head
    input_shape = (4, 4)
    networks = [{"layers": [32, 32]}, {"layers": [16]}]
    output_dim = 8
    batch = 8

    key = jax.random.PRNGKey(0)
    key, kx = jax.random.split(key)
    x = jax.random.normal(kx, (batch,) + input_shape, jnp.float32)

    params = init_hra_params(key, input_shape, networks, output_dim)

    # One-time packing (hoisted out of the per-step path).
    packed, meta = pack_hra_params(params)

    fwd = build_hra_forward(meta, single_buffer_weights=True)
    try:
        q_values = [jax.block_until_ready(q) for q in fwd(x, packed)]
    except Exception:
        # This JAX build rejects pipeline_mode=pl.Buffered(1); fall back to
        # default (double-buffered) weight specs.
        fwd = build_hra_forward(meta, single_buffer_weights=False)
        q_values = [jax.block_until_ready(q) for q in fwd(x, packed)]

    # Tight check vs. a reference using the same bf16-matmul / f32-acc path.
    q_ref_bf16 = hra_forward_ref(x, params, compute_dtype=jnp.bfloat16)
    # Loose check vs. the full-f32 PyTorch-equivalent reference.
    q_ref_f32 = hra_forward_ref(x, params, compute_dtype=jnp.float32)

    for q_k, q_rb, q_rf in zip(q_values, q_ref_bf16, q_ref_f32):
        assert q_k.shape == (batch, output_dim)
        assert jnp.allclose(q_k, q_rb, atol=1e-3, rtol=1e-3)
        assert jnp.allclose(q_k, q_rf, atol=3e-2, rtol=3e-2)

    print("KERNEL_OK")
</pallas_src>

<mosaic_0001>
module attributes {stable_mosaic.version = 11 : i64} {
  func.func @kernel(%arg0: i32, %arg1: memref<16x128xbf16, #tpu.memory_space<vmem>>, %arg2: memref<128x256xbf16, #tpu.memory_space<vmem>>, %arg3: memref<1x256xf32, #tpu.memory_space<vmem>>, %arg4: memref<128x128xbf16, #tpu.memory_space<vmem>>, %arg5: memref<1x128xf32, #tpu.memory_space<vmem>>, %arg6: memref<128x128xbf16, #tpu.memory_space<vmem>>, %arg7: memref<1x128xf32, #tpu.memory_space<vmem>>, %arg8: memref<128x128xbf16, #tpu.memory_space<vmem>>, %arg9: memref<1x128xf32, #tpu.memory_space<vmem>>, %arg10: memref<16x256xf32, #tpu.memory_space<vmem>>) attributes {dimension_semantics = [#tpu.dimension_semantics<parallel>], iteration_bounds = array<i64: 1>, scalar_prefetch = 0 : i64, scratch_operands = 0 : i64, tpu.core_type = #tpu.core_type<tc>, window_params = [{transform_indices = @transform_0, window_bounds = array<i64: 16, 128>}, {pipeline_mode = #tpu.pipeline_mode<synchronous>, transform_indices = @transform_1, window_bounds = array<i64: 128, 256>}, {pipeline_mode = #tpu.pipeline_mode<synchronous>, transform_indices = @transform_2, window_bounds = array<i64: 1, 256>}, {pipeline_mode = #tpu.pipeline_mode<synchronous>, transform_indices = @transform_3, window_bounds = array<i64: 128, 128>}, {pipeline_mode = #tpu.pipeline_mode<synchronous>, transform_indices = @transform_4, window_bounds = array<i64: 1, 128>}, {pipeline_mode = #tpu.pipeline_mode<synchronous>, transform_indices = @transform_5, window_bounds = array<i64: 128, 128>}, {pipeline_mode = #tpu.pipeline_mode<synchronous>, transform_indices = @transform_6, window_bounds = array<i64: 1, 128>}, {pipeline_mode = #tpu.pipeline_mode<synchronous>, transform_indices = @transform_7, window_bounds = array<i64: 128, 128>}, {pipeline_mode = #tpu.pipeline_mode<synchronous>, transform_indices = @transform_8, window_bounds = array<i64: 1, 128>}, {transform_indices = @transform_9, window_bounds = array<i64: 16, 256>}]} {
    %c0 = arith.constant 0 : index
    %c0_0 = arith.constant 0 : index
    %0 = vector.load %arg1[%c0, %c0_0] : memref<16x128xbf16, #tpu.memory_space<vmem>>, vector<16x128xbf16>
    %c0_1 = arith.constant 0 : index
    %c0_2 = arith.constant 0 : index
    %1 = vector.load %arg2[%c0_1, %c0_2] : memref<128x256xbf16, #tpu.memory_space<vmem>>, vector<128x256xbf16>
    %c0_3 = arith.constant 0 : index
    %c0_4 = arith.constant 0 : index
    %2 = vector.load %arg3[%c0_3, %c0_4] : memref<1x256xf32, #tpu.memory_space<vmem>>, vector<1x256xf32>
    %cst = arith.constant dense<0.000000e+00> : vector<16x256xf32>
    %3 = tpu.matmul %0, %1, %cst {dimension_numbers = #tpu.dot_dimension_numbers<[1], [0], [0], [1], [0, 0, 1, 1], [], []>} : vector<16x128xbf16>, vector<128x256xbf16>, vector<16x256xf32> -> vector<16x256xf32>
    %4 = vector.broadcast %2 : vector<1x256xf32> to vector<16x256xf32>
    %5 = arith.addf %3, %4 : vector<16x256xf32>
    %cst_5 = arith.constant 0.000000e+00 : f32
    %6 = vector.broadcast %cst_5 : f32 to vector<16x256xf32>
    %7 = arith.maximumf %5, %6 : vector<16x256xf32>
    %8 = vector.extract_strided_slice %7 {offsets = [0, 0], sizes = [16, 128], strides = [1, 1]} : vector<16x256xf32> to vector<16x128xf32>
    %9 = vector.extract_strided_slice %7 {offsets = [0, 128], sizes = [16, 128], strides = [1, 1]} : vector<16x256xf32> to vector<16x128xf32>
    %c0_6 = arith.constant 0 : index
    %c0_7 = arith.constant 0 : index
    %10 = vector.load %arg4[%c0_6, %c0_7] : memref<128x128xbf16, #tpu.memory_space<vmem>>, vector<128x128xbf16>
    %c0_8 = arith.constant 0 : index
    %c0_9 = arith.constant 0 : index
    %11 = vector.load %arg5[%c0_8, %c0_9] : memref<1x128xf32, #tpu.memory_space<vmem>>, vector<1x128xf32>
    %12 = arith.truncf %8 : vector<16x128xf32> to vector<16x128xbf16>
    %cst_10 = arith.constant dense<0.000000e+00> : vector<16x128xf32>
    %13 = tpu.matmul %12, %10, %cst_10 {dimension_numbers = #tpu.dot_dimension_numbers<[1], [0], [0], [1], [0, 0, 1, 1], [], []>} : vector<16x128xbf16>, vector<128x128xbf16>, vector<16x128xf32> -> vector<16x128xf32>
    %14 = vector.broadcast %11 : vector<1x128xf32> to vector<16x128xf32>
    %15 = arith.addf %13, %14 : vector<16x128xf32>
    %cst_11 = arith.constant 0.000000e+00 : f32
    %16 = vector.broadcast %cst_11 : f32 to vector<16x128xf32>
    %17 = arith.maximumf %15, %16 : vector<16x128xf32>
    %c0_12 = arith.constant 0 : index
    %c0_13 = arith.constant 0 : index
    %18 = vector.load %arg6[%c0_12, %c0_13] : memref<128x128xbf16, #tpu.memory_space<vmem>>, vector<128x128xbf16>
    %c0_14 = arith.constant 0 : index
    %c0_15 = arith.constant 0 : index
    %19 = vector.load %arg7[%c0_14, %c0_15] : memref<1x128xf32, #tpu.memory_space<vmem>>, vector<1x128xf32>
    %20 = arith.truncf %17 : vector<16x128xf32> to vector<16x128xbf16>
    %cst_16 = arith.constant dense<0.000000e+00> : vector<16x128xf32>
    %21 = tpu.matmul %20, %18, %cst_16 {dimension_numbers = #tpu.dot_dimension_numbers<[1], [0], [0], [1], [0, 0, 1, 1], [], []>} : vector<16x128xbf16>, vector<128x128xbf16>, vector<16x128xf32> -> vector<16x128xf32>
    %22 = vector.broadcast %19 : vector<1x128xf32> to vector<16x128xf32>
    %23 = arith.addf %21, %22 : vector<16x128xf32>
    %c0_17 = arith.constant 0 : index
    %c0_18 = arith.constant 0 : index
    %24 = vector.load %arg10[%c0_17, %c0_18] : memref<16x256xf32, #tpu.memory_space<vmem>>, vector<16x128xf32>
    tpu.vector_store %arg10[%c0_17, %c0_18], %23 {strides = array<i32>} : memref<16x256xf32, #tpu.memory_space<vmem>>, vector<16x128xf32>,
    %c0_19 = arith.constant 0 : index
    %c0_20 = arith.constant 0 : index
    %25 = vector.load %arg8[%c0_19, %c0_20] : memref<128x128xbf16, #tpu.memory_space<vmem>>, vector<128x128xbf16>
    %c0_21 = arith.constant 0 : index
    %c0_22 = arith.constant 0 : index
    %26 = vector.load %arg9[%c0_21, %c0_22] : memref<1x128xf32, #tpu.memory_space<vmem>>, vector<1x128xf32>
    %27 = arith.truncf %9 : vector<16x128xf32> to vector<16x128xbf16>
    %cst_23 = arith.constant dense<0.000000e+00> : vector<16x128xf32>
    %28 = tpu.matmul %27, %25, %cst_23 {dimension_numbers = #tpu.dot_dimension_numbers<[1], [0], [0], [1], [0, 0, 1, 1], [], []>} : vector<16x128xbf16>, vector<128x128xbf16>, vector<16x128xf32> -> vector<16x128xf32>
    %29 = vector.broadcast %26 : vector<1x128xf32> to vector<16x128xf32>
    %30 = arith.addf %28, %29 : vector<16x128xf32>
    %c0_24 = arith.constant 0 : index
    %c128 = arith.constant 128 : index
    %31 = vector.load %arg10[%c0_24, %c128] : memref<16x256xf32, #tpu.memory_space<vmem>>, vector<16x128xf32>
    tpu.vector_store %arg10[%c0_24, %c128], %30 {strides = array<i32>} : memref<16x256xf32, #tpu.memory_space<vmem>>, vector<16x128xf32>,
    return
  }
  func.func @transform_0(%arg0: i32) -> (i32, i32) {
    %c0_i32 = arith.constant 0 : i32
    %c0_i32_0 = arith.constant 0 : i32
    return %arg0, %c0_i32 : i32, i32
  }
  func.func @transform_1(%arg0: i32) -> (i32, i32) {
    %c0_i32 = arith.constant 0 : i32
    %c0_i32_0 = arith.constant 0 : i32
    %c0_i32_1 = arith.constant 0 : i32
    return %c0_i32, %c0_i32_0 : i32, i32
  }
  func.func @transform_2(%arg0: i32) -> (i32, i32) {
    %c0_i32 = arith.constant 0 : i32
    %c0_i32_0 = arith.constant 0 : i32
    %c0_i32_1 = arith.constant 0 : i32
    return %c0_i32, %c0_i32_0 : i32, i32
  }
  func.func @transform_3(%arg0: i32) -> (i32, i32) {
    %c0_i32 = arith.constant 0 : i32
    %c0_i32_0 = arith.constant 0 : i32
    %c0_i32_1 = arith.constant 0 : i32
    return %c0_i32, %c0_i32_0 : i32, i32
  }
  func.func @transform_4(%arg0: i32) -> (i32, i32) {
    %c0_i32 = arith.constant 0 : i32
    %c0_i32_0 = arith.constant 0 : i32
    %c0_i32_1 = arith.constant 0 : i32
    return %c0_i32, %c0_i32_0 : i32, i32
  }
  func.func @transform_5(%arg0: i32) -> (i32, i32) {
    %c0_i32 = arith.constant 0 : i32
    %c0_i32_0 = arith.constant 0 : i32
    %c0_i32_1 = arith.constant 0 : i32
    return %c0_i32, %c0_i32_0 : i32, i32
  }
  func.func @transform_6(%arg0: i32) -> (i32, i32) {
    %c0_i32 = arith.constant 0 : i32
    %c0_i32_0 = arith.constant 0 : i32
    %c0_i32_1 = arith.constant 0 : i32
    return %c0_i32, %c0_i32_0 : i32, i32
  }
  func.func @transform_7(%arg0: i32) -> (i32, i32) {
    %c0_i32 = arith.constant 0 : i32
    %c0_i32_0 = arith.constant 0 : i32
    %c0_i32_1 = arith.constant 0 : i32
    return %c0_i32, %c0_i32_0 : i32, i32
  }
  func.func @transform_8(%arg0: i32) -> (i32, i32) {
    %c0_i32 = arith.constant 0 : i32
    %c0_i32_0 = arith.constant 0 : i32
    %c0_i32_1 = arith.constant 0 : i32
    return %c0_i32, %c0_i32_0 : i32, i32
  }
  func.func @transform_9(%arg0: i32) -> (i32, i32) {
    %c0_i32 = arith.constant 0 : i32
    %c0_i32_0 = arith.constant 0 : i32
    return %arg0, %c0_i32 : i32, i32
  }
}

module attributes {stable_mosaic.version = 11 : i64} {
  func.func @kernel(%arg0: i32, %arg1: memref<16x128xbf16, #tpu.memory_space<vmem>>, %arg2: memref<128x256xbf16, #tpu.memory_space<vmem>>, %arg3: memref<1x256xf32, #tpu.memory_space<vmem>>, %arg4: memref<128x128xbf16, #tpu.memory_space<vmem>>, %arg5: memref<1x128xf32, #tpu.memory_space<vmem>>, %arg6: memref<128x128xbf16, #tpu.memory_space<vmem>>, %arg7: memref<1x128xf32, #tpu.memory_space<vmem>>, %arg8: memref<128x128xbf16, #tpu.memory_space<vmem>>, %arg9: memref<1x128xf32, #tpu.memory_space<vmem>>, %arg10: memref<16x256xf32, #tpu.memory_space<vmem>>) attributes {dimension_semantics = [#tpu.dimension_semantics<parallel>], iteration_bounds = array<i64: 1>, scalar_prefetch = 0 : i64, scratch_operands = 0 : i64, tpu.core_type = #tpu.core_type<tc>, window_params = [{transform_indices = @transform_0, window_bounds = array<i64: 16, 128>}, {pipeline_mode = #tpu.pipeline_mode<synchronous>, transform_indices = @transform_1, window_bounds = array<i64: 128, 256>}, {pipeline_mode = #tpu.pipeline_mode<synchronous>, transform_indices = @transform_2, window_bounds = array<i64: 1, 256>}, {pipeline_mode = #tpu.pipeline_mode<synchronous>, transform_indices = @transform_3, window_bounds = array<i64: 128, 128>}, {pipeline_mode = #tpu.pipeline_mode<synchronous>, transform_indices = @transform_4, window_bounds = array<i64: 1, 128>}, {pipeline_mode = #tpu.pipeline_mode<synchronous>, transform_indices = @transform_5, window_bounds = array<i64: 128, 128>}, {pipeline_mode = #tpu.pipeline_mode<synchronous>, transform_indices = @transform_6, window_bounds = array<i64: 1, 128>}, {pipeline_mode = #tpu.pipeline_mode<synchronous>, transform_indices = @transform_7, window_bounds = array<i64: 128, 128>}, {pipeline_mode = #tpu.pipeline_mode<synchronous>, transform_indices = @transform_8, window_bounds = array<i64: 1, 128>}, {transform_indices = @transform_9, window_bounds = array<i64: 16, 256>}]} {
    %c0 = arith.constant 0 : index
    %c0_0 = arith.constant 0 : index
    %0 = vector.load %arg1[%c0, %c0_0] : memref<16x128xbf16, #tpu.memory_space<vmem>>, vector<16x128xbf16>
    %c0_1 = arith.constant 0 : index
    %c0_2 = arith.constant 0 : index
    %1 = vector.load %arg2[%c0_1, %c0_2] : memref<128x256xbf16, #tpu.memory_space<vmem>>, vector<128x256xbf16>
    %c0_3 = arith.constant 0 : index
    %c0_4 = arith.constant 0 : index
    %2 = vector.load %arg3[%c0_3, %c0_4] : memref<1x256xf32, #tpu.memory_space<vmem>>, vector<1x256xf32>
    %cst = arith.constant dense<0.000000e+00> : vector<16x256xf32>
    %3 = tpu.matmul %0, %1, %cst {dimension_numbers = #tpu.dot_dimension_numbers<[1], [0], [0], [1], [0, 0, 1, 1], [], []>} : vector<16x128xbf16>, vector<128x256xbf16>, vector<16x256xf32> -> vector<16x256xf32>
    %4 = vector.broadcast %2 : vector<1x256xf32> to vector<16x256xf32>
    %5 = arith.addf %3, %4 : vector<16x256xf32>
    %cst_5 = arith.constant 0.000000e+00 : f32
    %6 = vector.broadcast %cst_5 : f32 to vector<16x256xf32>
    %7 = arith.maximumf %5, %6 : vector<16x256xf32>
    %8 = vector.extract_strided_slice %7 {offsets = [0, 0], sizes = [16, 128], strides = [1, 1]} : vector<16x256xf32> to vector<16x128xf32>
    %9 = vector.extract_strided_slice %7 {offsets = [0, 128], sizes = [16, 128], strides = [1, 1]} : vector<16x256xf32> to vector<16x128xf32>
    %c0_6 = arith.constant 0 : index
    %c0_7 = arith.constant 0 : index
    %10 = vector.load %arg4[%c0_6, %c0_7] : memref<128x128xbf16, #tpu.memory_space<vmem>>, vector<128x128xbf16>
    %c0_8 = arith.constant 0 : index
    %c0_9 = arith.constant 0 : index
    %11 = vector.load %arg5[%c0_8, %c0_9] : memref<1x128xf32, #tpu.memory_space<vmem>>, vector<1x128xf32>
    %12 = arith.truncf %8 : vector<16x128xf32> to vector<16x128xbf16>
    %cst_10 = arith.constant dense<0.000000e+00> : vector<16x128xf32>
    %13 = tpu.matmul %12, %10, %cst_10 {dimension_numbers = #tpu.dot_dimension_numbers<[1], [0], [0], [1], [0, 0, 1, 1], [], []>} : vector<16x128xbf16>, vector<128x128xbf16>, vector<16x128xf32> -> vector<16x128xf32>
    %14 = vector.broadcast %11 : vector<1x128xf32> to vector<16x128xf32>
    %15 = arith.addf %13, %14 : vector<16x128xf32>
    %cst_11 = arith.constant 0.000000e+00 : f32
    %16 = vector.broadcast %cst_11 : f32 to vector<16x128xf32>
    %17 = arith.maximumf %15, %16 : vector<16x128xf32>
    %c0_12 = arith.constant 0 : index
    %c0_13 = arith.constant 0 : index
    %18 = vector.load %arg6[%c0_12, %c0_13] : memref<128x128xbf16, #tpu.memory_space<vmem>>, vector<128x128xbf16>
    %c0_14 = arith.constant 0 : index
    %c0_15 = arith.constant 0 : index
    %19 = vector.load %arg7[%c0_14, %c0_15] : memref<1x128xf32, #tpu.memory_space<vmem>>, vector<1x128xf32>
    %20 = arith.truncf %17 : vector<16x128xf32> to vector<16x128xbf16>
    %cst_16 = arith.constant dense<0.000000e+00> : vector<16x128xf32>
    %21 = tpu.matmul %20, %18, %cst_16 {dimension_numbers = #tpu.dot_dimension_numbers<[1], [0], [0], [1], [0, 0, 1, 1], [], []>} : vector<16x128xbf16>, vector<128x128xbf16>, vector<16x128xf32> -> vector<16x128xf32>
    %22 = vector.broadcast %19 : vector<1x128xf32> to vector<16x128xf32>
    %23 = arith.addf %21, %22 : vector<16x128xf32>
    %c0_17 = arith.constant 0 : index
    %c0_18 = arith.constant 0 : index
    %24 = vector.load %arg10[%c0_17, %c0_18] : memref<16x256xf32, #tpu.memory_space<vmem>>, vector<16x128xf32>
    tpu.vector_store %arg10[%c0_17, %c0_18], %23 {strides = array<i32>} : memref<16x256xf32, #tpu.memory_space<vmem>>, vector<16x128xf32>,
    %c0_19 = arith.constant 0 : index
    %c0_20 = arith.constant 0 : index
    %25 = vector.load %arg8[%c0_19, %c0_20] : memref<128x128xbf16, #tpu.memory_space<vmem>>, vector<128x128xbf16>
    %c0_21 = arith.constant 0 : index
    %c0_22 = arith.constant 0 : index
    %26 = vector.load %arg9[%c0_21, %c0_22] : memref<1x128xf32, #tpu.memory_space<vmem>>, vector<1x128xf32>
    %27 = arith.truncf %9 : vector<16x128xf32> to vector<16x128xbf16>
    %cst_23 = arith.constant dense<0.000000e+00> : vector<16x128xf32>
    %28 = tpu.matmul %27, %25, %cst_23 {dimension_numbers = #tpu.dot_dimension_numbers<[1], [0], [0], [1], [0, 0, 1, 1], [], []>} : vector<16x128xbf16>, vector<128x128xbf16>, vector<16x128xf32> -> vector<16x128xf32>
    %29 = vector.broadcast %26 : vector<1x128xf32> to vector<16x128xf32>
    %30 = arith.addf %28, %29 : vector<16x128xf32>
    %c0_24 = arith.constant 0 : index
    %c128 = arith.constant 128 : index
    %31 = vector.load %arg10[%c0_24, %c128] : memref<16x256xf32, #tpu.memory_space<vmem>>, vector<16x128xf32>
    tpu.vector_store %arg10[%c0_24, %c128], %30 {strides = array<i32>} : memref<16x256xf32, #tpu.memory_space<vmem>>, vector<16x128xf32>,
    return
  }
  func.func @transform_0(%arg0: i32) -> (i32, i32) {
    %c0_i32 = arith.constant 0 : i32
    %c0_i32_0 = arith.constant 0 : i32
    return %arg0, %c0_i32 : i32, i32
  }
  func.func @transform_1(%arg0: i32) -> (i32, i32) {
    %c0_i32 = arith.constant 0 : i32
    %c0_i32_0 = arith.constant 0 : i32
    %c0_i32_1 = arith.constant 0 : i32
    return %c0_i32, %c0_i32_0 : i32, i32
  }
  func.func @transform_2(%arg0: i32) -> (i32, i32) {
    %c0_i32 = arith.constant 0 : i32
    %c0_i32_0 = arith.constant 0 : i32
    %c0_i32_1 = arith.constant 0 : i32
    return %c0_i32, %c0_i32_0 : i32, i32
  }
  func.func @transform_3(%arg0: i32) -> (i32, i32) {
    %c0_i32 = arith.constant 0 : i32
    %c0_i32_0 = arith.constant 0 : i32
    %c0_i32_1 = arith.constant 0 : i32
    return %c0_i32, %c0_i32_0 : i32, i32
  }
  func.func @transform_4(%arg0: i32) -> (i32, i32) {
    %c0_i32 = arith.constant 0 : i32
    %c0_i32_0 = arith.constant 0 : i32
    %c0_i32_1 = arith.constant 0 : i32
    return %c0_i32, %c0_i32_0 : i32, i32
  }
  func.func @transform_5(%arg0: i32) -> (i32, i32) {
    %c0_i32 = arith.constant 0 : i32
    %c0_i32_0 = arith.constant 0 : i32
    %c0_i32_1 = arith.constant 0 : i32
    return %c0_i32, %c0_i32_0 : i32, i32
  }
  func.func @transform_6(%arg0: i32) -> (i32, i32) {
    %c0_i32 = arith.constant 0 : i32
    %c0_i32_0 = arith.constant 0 : i32
    %c0_i32_1 = arith.constant 0 : i32
    return %c0_i32, %c0_i32_0 : i32, i32
  }
  func.func @transform_7(%arg0: i32) -> (i32, i32) {
    %c0_i32 = arith.constant 0 : i32
    %c0_i32_0 = arith.constant 0 : i32
    %c0_i32_1 = arith.constant 0 : i32
    return %c0_i32, %c0_i32_0 : i32, i32
  }
  func.func @transform_8(%arg0: i32) -> (i32, i32) {
    %c0_i32 = arith.constant 0 : i32
    %c0_i32_0 = arith.constant 0 : i32
    %c0_i32_1 = arith.constant 0 : i32
    return %c0_i32, %c0_i32_0 : i32, i32
  }
  func.func @transform_9(%arg0: i32) -> (i32, i32) {
    %c0_i32 = arith.constant 0 : i32
    %c0_i32_0 = arith.constant 0 : i32
    return %arg0, %c0_i32 : i32, i32
  }
}

</mosaic_0001>

<llo_original>
// kernel: forward.1
$region0: #{forward.1}
  #allocation0 [shape = 'u32[]', space=smem, size = 0x4, offset = 0x4, fixed_abs, tag = 'smem constant byte address 0x4 - core index']
  #allocation1 [shape = 'u32[72,128]{1,0:T(1,128)}', space=vmem, size = 0x9000, scoped, tag = 'internal scratch']
  %s0 = inlined_call_operand.vmem [shape: bf16[16,128], index: 0, kind: input, shape index: {}]
  %s1 = inlined_call_operand.hbm [shape: bf16[128,256], index: 1, kind: input, shape index: {}]
  %s2 = inlined_call_operand.vmem [shape: f32[1,256], index: 2, kind: input, shape index: {}]
  %s3 = inlined_call_operand.hbm [shape: bf16[128,128], index: 3, kind: input, shape index: {}]
  %s4 = inlined_call_operand.vmem [shape: f32[1,128], index: 4, kind: input, shape index: {}]
  %s5 = inlined_call_operand.hbm [shape: bf16[128,128], index: 5, kind: input, shape index: {}]
  %s6 = inlined_call_operand.vmem [shape: f32[1,128], index: 6, kind: input, shape index: {}]
  %s7 = inlined_call_operand.hbm [shape: bf16[128,128], index: 7, kind: input, shape index: {}]
  %s8 = inlined_call_operand.vmem [shape: f32[1,128], index: 8, kind: input, shape index: {}]
  %s9 = inlined_call_operand.vmem [shape: f32[16,256], index: 9, kind: output, shape index: {}]
  %s10 = sld [smem:[#allocation0]]
  $region62: #{forward.1} parent=0
    _
  %s12 = ssub.s32 1, %s10
  %s13 = scalar_select 0, %s12, %s10
  $region1: #{forward.1} parent=0
    #allocation2 [shape = 'u8[65536]{0}', space=vmem, size = 0x10000, scoped, tag = 'input window, operand 1, single buffered']
    #allocation3 [shape = 's32[1]{0}', space=sflag, size = 0x4, scoped, tag = 'scoped memory for forward.1']
    #allocation4 [shape = 'u8[32768]{0}', space=vmem, size = 0x8000, scoped, tag = 'input window, operand 3, single buffered']
    #allocation5 [shape = 's32[1]{0}', space=sflag, size = 0x4, scoped, tag = 'scoped memory for forward.1']
    #allocation6 [shape = 'u8[32768]{0}', space=vmem, size = 0x8000, scoped, tag = 'input window, operand 5, single buffered']
    #allocation7 [shape = 'u8[32768]{0}', space=vmem, size = 0x8000, scoped, tag = 'input window, operand 7, single buffered']
    #allocation8 [shape = 's32[1]{0}', space=sflag, size = 0x4, scoped, tag = 'scoped memory for forward.1']
    %14 = vsyncpa [#allocation3], 0
    %15 = vsyncpa [#allocation5], 0
    %16 = vsyncpa [#allocation8], 0
    // Predicated region
    $region2: #{forward.1} parent=1 // pred_check
      _
    $region3: #{forward.1} parent=1 // pred_check_branch
      %18 = sbr.rel (0) target = $region5
    $region4: #{forward.1} parent=1 // pred_region
      _
    $region5: #{forward.1} parent=1 // pred_fallthru
      _
    // Predicated region
    $region6: #{forward.1} parent=1 // pred_check
      _
    $region7: #{forward.1} parent=1 // pred_check_branch
      %20 = sbr.rel (0) target = $region9
    $region8: #{forward.1} parent=1 // pred_region
      %22 = vsyncadd [#allocation3], 0
      %s23 = sshll.u32 %s1, 4
      %s24 = int_to_ptr.hbm [resolvable:$true] %s23
      %s25 = sshll.u32 [#allocation2], 4
      %s26 = int_to_ptr.vmem [resolvable:$true] %s25
      %31 = dma.hbm_to_vmem [thread:$0]  %s24, 2048, %s26, [#allocation3], 128, 128, 8
    $region9: #{forward.1} parent=1 // pred_fallthru
      _
    // Predicated region
    $region10: #{forward.1} parent=1 // pred_check
      _
    $region11: #{forward.1} parent=1 // pred_check_branch
      %33 = sbr.rel (0) target = $region13
    $region12: #{forward.1} parent=1 // pred_region
      _
    $region13: #{forward.1} parent=1 // pred_fallthru
      _
    // Predicated region
    $region14: #{forward.1} parent=1 // pred_check
      _
    $region15: #{forward.1} parent=1 // pred_check_branch
      %35 = sbr.rel (0) target = $region17
    $region16: #{forward.1} parent=1 // pred_region
      %37 = vsyncadd [#allocation5], 0
      %s38 = sshll.u32 %s3, 4
      %s39 = int_to_ptr.hbm [resolvable:$true] %s38
      %s40 = sshll.u32 [#allocation4], 4
      %s41 = int_to_ptr.vmem [resolvable:$true] %s40
      %46 = dma.hbm_to_vmem [thread:$0]  %s39, 1024, %s41, [#allocation5], 64, 64, 4
    $region17: #{forward.1} parent=1 // pred_fallthru
      _
    // Predicated region
    $region18: #{forward.1} parent=1 // pred_check
      _
    $region19: #{forward.1} parent=1 // pred_check_branch
      %48 = sbr.rel (0) target = $region21
    $region20: #{forward.1} parent=1 // pred_region
      _
    $region21: #{forward.1} parent=1 // pred_fallthru
      _
    // Predicated region
    $region22: #{forward.1} parent=1 // pred_check
      _
    $region23: #{forward.1} parent=1 // pred_check_branch
      %50 = sbr.rel (0) target = $region25
    $region24: #{forward.1} parent=1 // pred_region
      %52 = vsyncadd [#allocation5], 0
      %s53 = sshll.u32 %s5, 4
      %s54 = int_to_ptr.hbm [resolvable:$true] %s53
      %s55 = sshll.u32 [#allocation6], 4
      %s56 = int_to_ptr.vmem [resolvable:$true] %s55
      %61 = dma.hbm_to_vmem [thread:$0]  %s54, 1024, %s56, [#allocation5], 64, 64, 4
    $region25: #{forward.1} parent=1 // pred_fallthru
      _
    // Predicated region
    $region26: #{forward.1} parent=1 // pred_check
      _
    $region27: #{forward.1} parent=1 // pred_check_branch
      %63 = sbr.rel (0) target = $region29
    $region28: #{forward.1} parent=1 // pred_region
      _
    $region29: #{forward.1} parent=1 // pred_fallthru
      _
    // Predicated region
    $region30: #{forward.1} parent=1 // pred_check
      _
    $region31: #{forward.1} parent=1 // pred_check_branch
      %65 = sbr.rel (0) target = $region33
    $region32: #{forward.1} parent=1 // pred_region
      %67 = vsyncadd [#allocation8], 0
      %s68 = sshll.u32 %s7, 4
      %s69 = int_to_ptr.hbm [resolvable:$true] %s68
      %s70 = sshll.u32 [#allocation7], 4
      %s71 = int_to_ptr.vmem [resolvable:$true] %s70
      %76 = dma.hbm_to_vmem [thread:$0]  %s69, 1024, %s71, [#allocation8], 64, 64, 4
    $region33: #{forward.1} parent=1 // pred_fallthru
      _
    // Predicated region
    $region34: #{forward.1} parent=1 // pred_check
      _
    $region35: #{forward.1} parent=1 // pred_check_branch
      %78 = sbr.rel (0) target = $region37
    $region36: #{forward.1} parent=1 // pred_region
      _
    $region37: #{forward.1} parent=1 // pred_fallthru
      _
    // Predicated region
    $region38: #{forward.1} parent=1 // pred_check
      _
    $region39: #{forward.1} parent=1 // pred_check_branch
      %80 = sbr.rel (0) target = $region41
    $region40: #{forward.1} parent=1 // pred_region
      %82 = dma.done [#allocation3], 2048
    $region41: #{forward.1} parent=1 // pred_fallthru
      _
    // Predicated region
    $region42: #{forward.1} parent=1 // pred_check
      _
    $region43: #{forward.1} parent=1 // pred_check_branch
      %84 = sbr.rel (0) target = $region45
    $region44: #{forward.1} parent=1 // pred_region
      %86 = dma.done [#allocation5], 1024
    $region45: #{forward.1} parent=1 // pred_fallthru
      _
    // Predicated region
    $region46: #{forward.1} parent=1 // pred_check
      _
    $region47: #{forward.1} parent=1 // pred_check_branch
      %88 = sbr.rel (0) target = $region49
    $region48: #{forward.1} parent=1 // pred_region
      %90 = dma.done [#allocation5], 1024
    $region49: #{forward.1} parent=1 // pred_fallthru
      _
    // Predicated region
    $region50: #{forward.1} parent=1 // pred_check
      _
    $region51: #{forward.1} parent=1 // pred_check_branch
      %92 = sbr.rel (0) target = $region53
    $region52: #{forward.1} parent=1 // pred_region
      %94 = dma.done [#allocation8], 1024
    $region53: #{forward.1} parent=1 // pred_fallthru
      _
    %v95 = vld [vmem:[%s0] sm:$0xf]
    %v96 = vld [vmem:[%s0 + $0x4] sm:$0xf]
    %v97 = vld [vmem:[#allocation2] sm:$0xff]
    %v98 = vld [vmem:[#allocation2 + $0x8] sm:$0xff]
    %v99 = vld [vmem:[#allocation2 + $0x10] sm:$0xff]
    %v100 = vld [vmem:[#allocation2 + $0x18] sm:$0xff]
    %v101 = vld [vmem:[#allocation2 + $0x20] sm:$0xff]
    %v102 = vld [vmem:[#allocation2 + $0x28] sm:$0xff]
    %v103 = vld [vmem:[#allocation2 + $0x30] sm:$0xff]
    %v104 = vld [vmem:[#allocation2 + $0x38] sm:$0xff]
    %v105 = vld [vmem:[#allocation2 + $0x40] sm:$0xff]
    %v106 = vld [vmem:[#allocation2 + $0x48] sm:$0xff]
    %v107 = vld [vmem:[#allocation2 + $0x50] sm:$0xff]
    %v108 = vld [vmem:[#allocation2 + $0x58] sm:$0xff]
    %v109 = vld [vmem:[#allocation2 + $0x60] sm:$0xff]
    %v110 = vld [vmem:[#allocation2 + $0x68] sm:$0xff]
    %v111 = vld [vmem:[#allocation2 + $0x70] sm:$0xff]
    %v112 = vld [vmem:[#allocation2 + $0x78] sm:$0xff]
    %v113 = vld [vmem:[%s2] sm:$0x3]
    %v115 = vperm.slane %v113, 0
    %v116 = vperm.slane %v113, 1
    %v121 = vunpack.c.l.b16 %v95
    %v122 = vunpack.c.l.b16 %v96
    %v123 = vpack.c.b16 %v122, %v121
    %v141 = vunpack.c.l.b16 %v97
    %v142 = vunpack.c.h.b16 %v97
    %v143 = vunpack.c.l.b16 %v98
    %v144 = vunpack.c.h.b16 %v98
    %v145 = vunpack.c.l.b16 %v99
    %v146 = vunpack.c.h.b16 %v99
    %v147 = vunpack.c.l.b16 %v100
    %v148 = vunpack.c.h.b16 %v100
    %v149 = vunpack.c.l.b16 %v101
    %v150 = vunpack.c.h.b16 %v101
    %v151 = vunpack.c.l.b16 %v102
    %v152 = vunpack.c.h.b16 %v102
    %v153 = vunpack.c.l.b16 %v103
    %v154 = vunpack.c.h.b16 %v103
    %v155 = vunpack.c.l.b16 %v104
    %v156 = vunpack.c.h.b16 %v104
    %v157 = vunpack.c.l.b16 %v105
    %v158 = vunpack.c.h.b16 %v105
    %v159 = vunpack.c.l.b16 %v106
    %v160 = vunpack.c.h.b16 %v106
    %v161 = vunpack.c.l.b16 %v107
    %v162 = vunpack.c.h.b16 %v107
    %v163 = vunpack.c.l.b16 %v108
    %v164 = vunpack.c.h.b16 %v108
    %v165 = vunpack.c.l.b16 %v109
    %v166 = vunpack.c.h.b16 %v109
    %v167 = vunpack.c.l.b16 %v110
    %v168 = vunpack.c.h.b16 %v110
    %v169 = vunpack.c.l.b16 %v111
    %v170 = vunpack.c.h.b16 %v111
    %v171 = vunpack.c.l.b16 %v112
    %v172 = vunpack.c.h.b16 %v112
    %v173 = vpack.c.b16 %v143, %v141
    %v174 = vpack.c.b16 %v144, %v142
    %v175 = vpack.c.b16 %v147, %v145
    %v176 = vpack.c.b16 %v148, %v146
    %v177 = vpack.c.b16 %v151, %v149
    %v178 = vpack.c.b16 %v152, %v150
    %v179 = vpack.c.b16 %v155, %v153
    %v180 = vpack.c.b16 %v156, %v154
    %v181 = vpack.c.b16 %v159, %v157
    %v182 = vpack.c.b16 %v160, %v158
    %v183 = vpack.c.b16 %v163, %v161
    %v184 = vpack.c.b16 %v164, %v162
    %v185 = vpack.c.b16 %v167, %v165
    %v186 = vpack.c.b16 %v168, %v166
    %v187 = vpack.c.b16 %v171, %v169
    %v188 = vpack.c.b16 %v172, %v170
    %205 = vmatpush.bf16.msra.mxu0 %v187
    %206 = vmatpush.bf16.msra.mxu0 %v185
    %207 = vmatpush.bf16.msra.mxu0 %v183
    %208 = vmatpush.bf16.msra.mxu0 %v181
    %209 = vmatpush.bf16.msra.mxu0 %v179
    %210 = vmatpush.bf16.msra.mxu0 %v177
    %211 = vmatpush.bf16.msra.mxu0 %v175
    %212 = vmatpush.bf16.msra.mxu0 %v173
    %213 = vmatmul.bf16.gmra.mxu0 %v123
    %v214 = vpop.f32.mrf.mxu0
    %v215 = vadd.f32 %v115, %v214
    %v216 = vpop.f32.mrf.mxu0
    %v217 = vadd.f32 %v115, %v216
    %218 = vdwg.mxu0
    %219 = vmatpush.bf16.msra.mxu0 %v188
    %220 = vmatpush.bf16.msra.mxu0 %v186
    %221 = vmatpush.bf16.msra.mxu0 %v184
    %222 = vmatpush.bf16.msra.mxu0 %v182
    %223 = vmatpush.bf16.msra.mxu0 %v180
    %224 = vmatpush.bf16.msra.mxu0 %v178
    %225 = vmatpush.bf16.msra.mxu0 %v176
    %226 = vmatpush.bf16.msra.mxu0 %v174
    %227 = vmatmul.bf16.gmra.mxu0 %v123
    %v228 = vpop.f32.mrf.mxu0
    %v229 = vadd.f32 %v116, %v228
    %v230 = vpop.f32.mrf.mxu0
    %v231 = vadd.f32 %v116, %v230
    %232 = vdwg.mxu0
    %v233 = vmax.f32 %v215, 0.0
    %v234 = vmax.f32 %v229, 0.0
    %v235 = vmax.f32 %v217, 0.0
    %v236 = vmax.f32 %v231, 0.0
    %v237 = vld [vmem:[#allocation4] sm:$0xf]
    %v238 = vld [vmem:[#allocation4 + $0x4] sm:$0xf]
    %v239 = vld [vmem:[#allocation4 + $0x8] sm:$0xf]
    %v240 = vld [vmem:[#allocation4 + $0xc] sm:$0xf]
    %v241 = vld [vmem:[#allocation4 + $0x10] sm:$0xf]
    %v242 = vld [vmem:[#allocation4 + $0x14] sm:$0xf]
    %v243 = vld [vmem:[#allocation4 + $0x18] sm:$0xf]
    %v244 = vld [vmem:[#allocation4 + $0x1c] sm:$0xf]
    %v245 = vld [vmem:[#allocation4 + $0x20] sm:$0xf]
    %v246 = vld [vmem:[#allocation4 + $0x24] sm:$0xf]
    %v247 = vld [vmem:[#allocation4 + $0x28] sm:$0xf]
    %v248 = vld [vmem:[#allocation4 + $0x2c] sm:$0xf]
    %v249 = vld [vmem:[#allocation4 + $0x30] sm:$0xf]
    %v250 = vld [vmem:[#allocation4 + $0x34] sm:$0xf]
    %v251 = vld [vmem:[#allocation4 + $0x38] sm:$0xf]
    %v252 = vld [vmem:[#allocation4 + $0x3c] sm:$0xf]
    %v253 = vld [vmem:[%s4] sm:$0x1]
    %v254 = vpack.c.bf16 %v235, %v233
    %v256 = vperm.slane %v253, 0
    %v274 = vunpack.c.l.b16 %v237
    %v275 = vunpack.c.l.b16 %v238
    %v276 = vunpack.c.l.b16 %v239
    %v277 = vunpack.c.l.b16 %v240
    %v278 = vunpack.c.l.b16 %v241
    %v279 = vunpack.c.l.b16 %v242
    %v280 = vunpack.c.l.b16 %v243
    %v281 = vunpack.c.l.b16 %v244
    %v282 = vunpack.c.l.b16 %v245
    %v283 = vunpack.c.l.b16 %v246
    %v284 = vunpack.c.l.b16 %v247
    %v285 = vunpack.c.l.b16 %v248
    %v286 = vunpack.c.l.b16 %v249
    %v287 = vunpack.c.l.b16 %v250
    %v288 = vunpack.c.l.b16 %v251
    %v289 = vunpack.c.l.b16 %v252
    %v290 = vpack.c.b16 %v275, %v274
    %v291 = vpack.c.b16 %v277, %v276
    %v292 = vpack.c.b16 %v279, %v278
    %v293 = vpack.c.b16 %v281, %v280
    %v294 = vpack.c.b16 %v283, %v282
    %v295 = vpack.c.b16 %v285, %v284
    %v296 = vpack.c.b16 %v287, %v286
    %v297 = vpack.c.b16 %v289, %v288
    %306 = vmatpush.bf16.msra.mxu0 %v297
    %307 = vmatpush.bf16.msra.mxu0 %v296
    %308 = vmatpush.bf16.msra.mxu0 %v295
    %309 = vmatpush.bf16.msra.mxu0 %v294
    %310 = vmatpush.bf16.msra.mxu0 %v293
    %311 = vmatpush.bf16.msra.mxu0 %v292
    %312 = vmatpush.bf16.msra.mxu0 %v291
    %313 = vmatpush.bf16.msra.mxu0 %v290
    %314 = vmatmul.bf16.gmra.mxu0 %v254
    %v315 = vpop.f32.mrf.mxu0
    %v316 = vadd.f32 %v256, %v315
    %v317 = vpop.f32.mrf.mxu0
    %v318 = vadd.f32 %v256, %v317
    %319 = vdwg.mxu0
    %v320 = vmax.f32 %v316, 0.0
    %v321 = vmax.f32 %v318, 0.0
    %v322 = vld [vmem:[#allocation6] sm:$0xf]
    %v323 = vld [vmem:[#allocation6 + $0x4] sm:$0xf]
    %v324 = vld [vmem:[#allocation6 + $0x8] sm:$0xf]
    %v325 = vld [vmem:[#allocation6 + $0xc] sm:$0xf]
    %v326 = vld [vmem:[#allocation6 + $0x10] sm:$0xf]
    %v327 = vld [vmem:[#allocation6 + $0x14] sm:$0xf]
    %v328 = vld [vmem:[#allocation6 + $0x18] sm:$0xf]
    %v329 = vld [vmem:[#allocation6 + $0x1c] sm:$0xf]
    %v330 = vld [vmem:[#allocation6 + $0x20] sm:$0xf]
    %v331 = vld [vmem:[#allocation6 + $0x24] sm:$0xf]
    %v332 = vld [vmem:[#allocation6 + $0x28] sm:$0xf]
    %v333 = vld [vmem:[#allocation6 + $0x2c] sm:$0xf]
    %v334 = vld [vmem:[#allocation6 + $0x30] sm:$0xf]
    %v335 = vld [vmem:[#allocation6 + $0x34] sm:$0xf]
    %v336 = vld [vmem:[#allocation6 + $0x38] sm:$0xf]
    %v337 = vld [vmem:[#allocation6 + $0x3c] sm:$0xf]
    %v338 = vld [vmem:[%s6] sm:$0x1]
    %v339 = vpack.c.bf16 %v321, %v320
    %v341 = vperm.slane %v338, 0
    %v359 = vunpack.c.l.b16 %v322
    %v360 = vunpack.c.l.b16 %v323
    %v361 = vunpack.c.l.b16 %v324
    %v362 = vunpack.c.l.b16 %v325
    %v363 = vunpack.c.l.b16 %v326
    %v364 = vunpack.c.l.b16 %v327
    %v365 = vunpack.c.l.b16 %v328
    %v366 = vunpack.c.l.b16 %v329
    %v367 = vunpack.c.l.b16 %v330
    %v368 = vunpack.c.l.b16 %v331
    %v369 = vunpack.c.l.b16 %v332
    %v370 = vunpack.c.l.b16 %v333
    %v371 = vunpack.c.l.b16 %v334
    %v372 = vunpack.c.l.b16 %v335
    %v373 = vunpack.c.l.b16 %v336
    %v374 = vunpack.c.l.b16 %v337
    %v375 = vpack.c.b16 %v360, %v359
    %v376 = vpack.c.b16 %v362, %v361
    %v377 = vpack.c.b16 %v364, %v363
    %v378 = vpack.c.b16 %v366, %v365
    %v379 = vpack.c.b16 %v368, %v367
    %v380 = vpack.c.b16 %v370, %v369
    %v381 = vpack.c.b16 %v372, %v371
    %v382 = vpack.c.b16 %v374, %v373
    %391 = vmatpush.bf16.msra.mxu0 %v382
    %392 = vmatpush.bf16.msra.mxu0 %v381
    %393 = vmatpush.bf16.msra.mxu0 %v380
    %394 = vmatpush.bf16.msra.mxu0 %v379
    %395 = vmatpush.bf16.msra.mxu0 %v378
    %396 = vmatpush.bf16.msra.mxu0 %v377
    %397 = vmatpush.bf16.msra.mxu0 %v376
    %398 = vmatpush.bf16.msra.mxu0 %v375
    %399 = vmatmul.bf16.gmra.mxu0 %v339
    %v400 = vpop.f32.mrf.mxu0
    %v401 = vadd.f32 %v341, %v400
    %v402 = vpop.f32.mrf.mxu0
    %v403 = vadd.f32 %v341, %v402
    %404 = vdwg.mxu0
    %405 = vst [vmem:[%s9] sm:$0xff] %v401
    %406 = vst [vmem:[%s9 + $0x10] sm:$0xff] %v403
    %v407 = vld [vmem:[#allocation7] sm:$0xf]
    %v408 = vld [vmem:[#allocation7 + $0x4] sm:$0xf]
    %v409 = vld [vmem:[#allocation7 + $0x8] sm:$0xf]
    %v410 = vld [vmem:[#allocation7 + $0xc] sm:$0xf]
    %v411 = vld [vmem:[#allocation7 + $0x10] sm:$0xf]
    %v412 = vld [vmem:[#allocation7 + $0x14] sm:$0xf]
    %v413 = vld [vmem:[#allocation7 + $0x18] sm:$0xf]
    %v414 = vld [vmem:[#allocation7 + $0x1c] sm:$0xf]
    %v415 = vld [vmem:[#allocation7 + $0x20] sm:$0xf]
    %v416 = vld [vmem:[#allocation7 + $0x24] sm:$0xf]
    %v417 = vld [vmem:[#allocation7 + $0x28] sm:$0xf]
    %v418 = vld [vmem:[#allocation7 + $0x2c] sm:$0xf]
    %v419 = vld [vmem:[#allocation7 + $0x30] sm:$0xf]
    %v420 = vld [vmem:[#allocation7 + $0x34] sm:$0xf]
    %v421 = vld [vmem:[#allocation7 + $0x38] sm:$0xf]
    %v422 = vld [vmem:[#allocation7 + $0x3c] sm:$0xf]
    %v423 = vld [vmem:[%s8] sm:$0x1]
    %v424 = vpack.c.bf16 %v236, %v234
    %v426 = vperm.slane %v423, 0
    %v444 = vunpack.c.l.b16 %v407
    %v445 = vunpack.c.l.b16 %v408
    %v446 = vunpack.c.l.b16 %v409
    %v447 = vunpack.c.l.b16 %v410
    %v448 = vunpack.c.l.b16 %v411
    %v449 = vunpack.c.l.b16 %v412
    %v450 = vunpack.c.l.b16 %v413
    %v451 = vunpack.c.l.b16 %v414
    %v452 = vunpack.c.l.b16 %v415
    %v453 = vunpack.c.l.b16 %v416
    %v454 = vunpack.c.l.b16 %v417
    %v455 = vunpack.c.l.b16 %v418
    %v456 = vunpack.c.l.b16 %v419
    %v457 = vunpack.c.l.b16 %v420
    %v458 = vunpack.c.l.b16 %v421
    %v459 = vunpack.c.l.b16 %v422
    %v460 = vpack.c.b16 %v445, %v444
    %v461 = vpack.c.b16 %v447, %v446
    %v462 = vpack.c.b16 %v449, %v448
    %v463 = vpack.c.b16 %v451, %v450
    %v464 = vpack.c.b16 %v453, %v452
    %v465 = vpack.c.b16 %v455, %v454
    %v466 = vpack.c.b16 %v457, %v456
    %v467 = vpack.c.b16 %v459, %v458
    %476 = vmatpush.bf16.msra.mxu0 %v467
    %477 = vmatpush.bf16.msra.mxu0 %v466
    %478 = vmatpush.bf16.msra.mxu0 %v465
    %479 = vmatpush.bf16.msra.mxu0 %v464
    %480 = vmatpush.bf16.msra.mxu0 %v463
    %481 = vmatpush.bf16.msra.mxu0 %v462
    %482 = vmatpush.bf16.msra.mxu0 %v461
    %483 = vmatpush.bf16.msra.mxu0 %v460
    %484 = vmatmul.bf16.gmra.mxu0 %v424
    %v485 = vpop.f32.mrf.mxu0
    %v486 = vadd.f32 %v426, %v485
    %v487 = vpop.f32.mrf.mxu0
    %v488 = vadd.f32 %v426, %v487
    %489 = vdwg.mxu0
    %490 = vst [vmem:[%s9 + $0x8] sm:$0xff] %v486
    %491 = vst [vmem:[%s9 + $0x18] sm:$0xff] %v488
    // Predicated region
    $region54: #{forward.1} parent=1 // pred_check
      _
    $region55: #{forward.1} parent=1 // pred_check_branch
      %493 = sbr.rel (0) target = $region57
    $region56: #{forward.1} parent=1 // pred_region
      _
    $region57: #{forward.1} parent=1 // pred_fallthru
      _
    // Predicated region
    $region58: #{forward.1} parent=1 // pred_check
      _
    $region59: #{forward.1} parent=1 // pred_check_branch
      %495 = sbr.rel (0) target = $region61
    $region60: #{forward.1} parent=1 // pred_region
      _
    $region61: #{forward.1} parent=1 // pred_fallthru
      _
    %496 = vsyncpa [#allocation3], 1
    %497 = vsyncpa [#allocation5], 1
    %498 = vsyncpa [#allocation8], 1

// kernel: forward.1
$region0: #{forward.1}
  #allocation0 [shape = 'u32[]', space=smem, size = 0x4, offset = 0x4, fixed_abs, tag = 'smem constant byte address 0x4 - core index']
  #allocation1 [shape = 'u32[72,128]{1,0:T(1,128)}', space=vmem, size = 0x9000, scoped, tag = 'internal scratch']
  %s0 = inlined_call_operand.vmem [shape: bf16[16,128], index: 0, kind: input, shape index: {}]
  %s1 = inlined_call_operand.hbm [shape: bf16[128,256], index: 1, kind: input, shape index: {}]
  %s2 = inlined_call_operand.vmem [shape: f32[1,256], index: 2, kind: input, shape index: {}]
  %s3 = inlined_call_operand.hbm [shape: bf16[128,128], index: 3, kind: input, shape index: {}]
  %s4 = inlined_call_operand.vmem [shape: f32[1,128], index: 4, kind: input, shape index: {}]
  %s5 = inlined_call_operand.hbm [shape: bf16[128,128], index: 5, kind: input, shape index: {}]
  %s6 = inlined_call_operand.vmem [shape: f32[1,128], index: 6, kind: input, shape index: {}]
  %s7 = inlined_call_operand.hbm [shape: bf16[128,128], index: 7, kind: input, shape index: {}]
  %s8 = inlined_call_operand.vmem [shape: f32[1,128], index: 8, kind: input, shape index: {}]
  %s9 = inlined_call_operand.vmem [shape: f32[16,256], index: 9, kind: output, shape index: {}]
  %s10 = sld [smem:[#allocation0]]
  $region62: #{forward.1} parent=0
    _
  %s12 = ssub.s32 1, %s10
  %s13 = scalar_select 0, %s12, %s10
  $region1: #{forward.1} parent=0
    #allocation2 [shape = 'u8[65536]{0}', space=vmem, size = 0x10000, scoped, tag = 'input window, operand 1, single buffered']
    #allocation3 [shape = 's32[1]{0}', space=sflag, size = 0x4, scoped, tag = 'scoped memory for forward.1']
    #allocation4 [shape = 'u8[32768]{0}', space=vmem, size = 0x8000, scoped, tag = 'input window, operand 3, single buffered']
    #allocation5 [shape = 's32[1]{0}', space=sflag, size = 0x4, scoped, tag = 'scoped memory for forward.1']
    #allocation6 [shape = 'u8[32768]{0}', space=vmem, size = 0x8000, scoped, tag = 'input window, operand 5, single buffered']
    #allocation7 [shape = 'u8[32768]{0}', space=vmem, size = 0x8000, scoped, tag = 'input window, operand 7, single buffered']
    #allocation8 [shape = 's32[1]{0}', space=sflag, size = 0x4, scoped, tag = 'scoped memory for forward.1']
    %14 = vsyncpa [#allocation3], 0
    %15 = vsyncpa [#allocation5], 0
    %16 = vsyncpa [#allocation8], 0
    // Predicated region
    $region2: #{forward.1} parent=1 // pred_check
      _
    $region3: #{forward.1} parent=1 // pred_check_branch
      %18 = sbr.rel (0) target = $region5
    $region4: #{forward.1} parent=1 // pred_region
      _
    $region5: #{forward.1} parent=1 // pred_fallthru
      _
    // Predicated region
    $region6: #{forward.1} parent=1 // pred_check
      _
    $region7: #{forward.1} parent=1 // pred_check_branch
      %20 = sbr.rel (0) target = $region9
    $region8: #{forward.1} parent=1 // pred_region
      %22 = vsyncadd [#allocation3], 0
      %s23 = sshll.u32 %s1, 4
      %s24 = int_to_ptr.hbm [resolvable:$true] %s23
      %s25 = sshll.u32 [#allocation2], 4
      %s26 = int_to_ptr.vmem [resolvable:$true] %s25
      %31 = dma.hbm_to_vmem [thread:$0]  %s24, 2048, %s26, [#allocation3], 128, 128, 8
    $region9: #{forward.1} parent=1 // pred_fallthru
      _
    // Predicated region
    $region10: #{forward.1} parent=1 // pred_check
      _
    $region11: #{forward.1} parent=1 // pred_check_branch
      %33 = sbr.rel (0) target = $region13
    $region12: #{forward.1} parent=1 // pred_region
      _
    $region13: #{forward.1} parent=1 // pred_fallthru
      _
    // Predicated region
    $region14: #{forward.1} parent=1 // pred_check
      _
    $region15: #{forward.1} parent=1 // pred_check_branch
      %35 = sbr.rel (0) target = $region17
    $region16: #{forward.1} parent=1 // pred_region
      %37 = vsyncadd [#allocation5], 0
      %s38 = sshll.u32 %s3, 4
      %s39 = int_to_ptr.hbm [resolvable:$true] %s38
      %s40 = sshll.u32 [#allocation4], 4
      %s41 = int_to_ptr.vmem [resolvable:$true] %s40
      %46 = dma.hbm_to_vmem [thread:$0]  %s39, 1024, %s41, [#allocation5], 64, 64, 4
    $region17: #{forward.1} parent=1 // pred_fallthru
      _
    // Predicated region
    $region18: #{forward.1} parent=1 // pred_check
      _
    $region19: #{forward.1} parent=1 // pred_check_branch
      %48 = sbr.rel (0) target = $region21
    $region20: #{forward.1} parent=1 // pred_region
      _
    $region21: #{forward.1} parent=1 // pred_fallthru
      _
    // Predicated region
    $region22: #{forward.1} parent=1 // pred_check
      _
    $region23: #{forward.1} parent=1 // pred_check_branch
      %50 = sbr.rel (0) target = $region25
    $region24: #{forward.1} parent=1 // pred_region
      %52 = vsyncadd [#allocation5], 0
      %s53 = sshll.u32 %s5, 4
      %s54 = int_to_ptr.hbm [resolvable:$true] %s53
      %s55 = sshll.u32 [#allocation6], 4
      %s56 = int_to_ptr.vmem [resolvable:$true] %s55
      %61 = dma.hbm_to_vmem [thread:$0]  %s54, 1024, %s56, [#allocation5], 64, 64, 4
    $region25: #{forward.1} parent=1 // pred_fallthru
      _
    // Predicated region
    $region26: #{forward.1} parent=1 // pred_check
      _
    $region27: #{forward.1} parent=1 // pred_check_branch
      %63 = sbr.rel (0) target = $region29
    $region28: #{forward.1} parent=1 // pred_region
      _
    $region29: #{forward.1} parent=1 // pred_fallthru
      _
    // Predicated region
    $region30: #{forward.1} parent=1 // pred_check
      _
    $region31: #{forward.1} parent=1 // pred_check_branch
      %65 = sbr.rel (0) target = $region33
    $region32: #{forward.1} parent=1 // pred_region
      %67 = vsyncadd [#allocation8], 0
      %s68 = sshll.u32 %s7, 4
      %s69 = int_to_ptr.hbm [resolvable:$true] %s68
      %s70 = sshll.u32 [#allocation7], 4
      %s71 = int_to_ptr.vmem [resolvable:$true] %s70
      %76 = dma.hbm_to_vmem [thread:$0]  %s69, 1024, %s71, [#allocation8], 64, 64, 4
    $region33: #{forward.1} parent=1 // pred_fallthru
      _
    // Predicated region
    $region34: #{forward.1} parent=1 // pred_check
      _
    $region35: #{forward.1} parent=1 // pred_check_branch
      %78 = sbr.rel (0) target = $region37
    $region36: #{forward.1} parent=1 // pred_region
      _
    $region37: #{forward.1} parent=1 // pred_fallthru
      _
    // Predicated region
    $region38: #{forward.1} parent=1 // pred_check
      _
    $region39: #{forward.1} parent=1 // pred_check_branch
      %80 = sbr.rel (0) target = $region41
    $region40: #{forward.1} parent=1 // pred_region
      %82 = dma.done [#allocation3], 2048
    $region41: #{forward.1} parent=1 // pred_fallthru
      _
    // Predicated region
    $region42: #{forward.1} parent=1 // pred_check
      _
    $region43: #{forward.1} parent=1 // pred_check_branch
      %84 = sbr.rel (0) target = $region45
    $region44: #{forward.1} parent=1 // pred_region
      %86 = dma.done [#allocation5], 1024
    $region45: #{forward.1} parent=1 // pred_fallthru
      _
    // Predicated region
    $region46: #{forward.1} parent=1 // pred_check
      _
    $region47: #{forward.1} parent=1 // pred_check_branch
      %88 = sbr.rel (0) target = $region49
    $region48: #{forward.1} parent=1 // pred_region
      %90 = dma.done [#allocation5], 1024
    $region49: #{forward.1} parent=1 // pred_fallthru
      _
    // Predicated region
    $region50: #{forward.1} parent=1 // pred_check
      _
    $region51: #{forward.1} parent=1 // pred_check_branch
      %92 = sbr.rel (0) target = $region53
    $region52: #{forward.1} parent=1 // pred_region
      %94 = dma.done [#allocation8], 1024
    $region53: #{forward.1} parent=1 // pred_fallthru
      _
    %v95 = vld [vmem:[%s0] sm:$0xf]
    %v96 = vld [vmem:[%s0 + $0x4] sm:$0xf]
    %v97 = vld [vmem:[#allocation2] sm:$0xff]
    %v98 = vld [vmem:[#allocation2 + $0x8] sm:$0xff]
    %v99 = vld [vmem:[#allocation2 + $0x10] sm:$0xff]
    %v100 = vld [vmem:[#allocation2 + $0x18] sm:$0xff]
    %v101 = vld [vmem:[#allocation2 + $0x20] sm:$0xff]
    %v102 = vld [vmem:[#allocation2 + $0x28] sm:$0xff]
    %v103 = vld [vmem:[#allocation2 + $0x30] sm:$0xff]
    %v104 = vld [vmem:[#allocation2 + $0x38] sm:$0xff]
    %v105 = vld [vmem:[#allocation2 + $0x40] sm:$0xff]
    %v106 = vld [vmem:[#allocation2 + $0x48] sm:$0xff]
    %v107 = vld [vmem:[#allocation2 + $0x50] sm:$0xff]
    %v108 = vld [vmem:[#allocation2 + $0x58] sm:$0xff]
    %v109 = vld [vmem:[#allocation2 + $0x60] sm:$0xff]
    %v110 = vld [vmem:[#allocation2 + $0x68] sm:$0xff]
    %v111 = vld [vmem:[#allocation2 + $0x70] sm:$0xff]
    %v112 = vld [vmem:[#allocation2 + $0x78] sm:$0xff]
    %v113 = vld [vmem:[%s2] sm:$0x3]
    %v115 = vperm.slane %v113, 0
    %v116 = vperm.slane %v113, 1
    %v121 = vunpack.c.l.b16 %v95
    %v122 = vunpack.c.l.b16 %v96
    %v123 = vpack.c.b16 %v122, %v121
    %v141 = vunpack.c.l.b16 %v97
    %v142 = vunpack.c.h.b16 %v97
    %v143 = vunpack.c.l.b16 %v98
    %v144 = vunpack.c.h.b16 %v98
    %v145 = vunpack.c.l.b16 %v99
    %v146 = vunpack.c.h.b16 %v99
    %v147 = vunpack.c.l.b16 %v100
    %v148 = vunpack.c.h.b16 %v100
    %v149 = vunpack.c.l.b16 %v101
    %v150 = vunpack.c.h.b16 %v101
    %v151 = vunpack.c.l.b16 %v102
    %v152 = vunpack.c.h.b16 %v102
    %v153 = vunpack.c.l.b16 %v103
    %v154 = vunpack.c.h.b16 %v103
    %v155 = vunpack.c.l.b16 %v104
    %v156 = vunpack.c.h.b16 %v104
    %v157 = vunpack.c.l.b16 %v105
    %v158 = vunpack.c.h.b16 %v105
    %v159 = vunpack.c.l.b16 %v106
    %v160 = vunpack.c.h.b16 %v106
    %v161 = vunpack.c.l.b16 %v107
    %v162 = vunpack.c.h.b16 %v107
    %v163 = vunpack.c.l.b16 %v108
    %v164 = vunpack.c.h.b16 %v108
    %v165 = vunpack.c.l.b16 %v109
    %v166 = vunpack.c.h.b16 %v109
    %v167 = vunpack.c.l.b16 %v110
    %v168 = vunpack.c.h.b16 %v110
    %v169 = vunpack.c.l.b16 %v111
    %v170 = vunpack.c.h.b16 %v111
    %v171 = vunpack.c.l.b16 %v112
    %v172 = vunpack.c.h.b16 %v112
    %v173 = vpack.c.b16 %v143, %v141
    %v174 = vpack.c.b16 %v144, %v142
    %v175 = vpack.c.b16 %v147, %v145
    %v176 = vpack.c.b16 %v148, %v146
    %v177 = vpack.c.b16 %v151, %v149
    %v178 = vpack.c.b16 %v152, %v150
    %v179 = vpack.c.b16 %v155, %v153
    %v180 = vpack.c.b16 %v156, %v154
    %v181 = vpack.c.b16 %v159, %v157
    %v182 = vpack.c.b16 %v160, %v158
    %v183 = vpack.c.b16 %v163, %v161
    %v184 = vpack.c.b16 %v164, %v162
    %v185 = vpack.c.b16 %v167, %v165
    %v186 = vpack.c.b16 %v168, %v166
    %v187 = vpack.c.b16 %v171, %v169
    %v188 = vpack.c.b16 %v172, %v170
    %205 = vmatpush.bf16.msra.mxu0 %v187
    %206 = vmatpush.bf16.msra.mxu0 %v185
    %207 = vmatpush.bf16.msra.mxu0 %v183
    %208 = vmatpush.bf16.msra.mxu0 %v181
    %209 = vmatpush.bf16.msra.mxu0 %v179
    %210 = vmatpush.bf16.msra.mxu0 %v177
    %211 = vmatpush.bf16.msra.mxu0 %v175
    %212 = vmatpush.bf16.msra.mxu0 %v173
    %213 = vmatmul.bf16.gmra.mxu0 %v123
    %v214 = vpop.f32.mrf.mxu0
    %v215 = vadd.f32 %v115, %v214
    %v216 = vpop.f32.mrf.mxu0
    %v217 = vadd.f32 %v115, %v216
    %218 = vdwg.mxu0
    %219 = vmatpush.bf16.msra.mxu0 %v188
    %220 = vmatpush.bf16.msra.mxu0 %v186
    %221 = vmatpush.bf16.msra.mxu0 %v184
    %222 = vmatpush.bf16.msra.mxu0 %v182
    %223 = vmatpush.bf16.msra.mxu0 %v180
    %224 = vmatpush.bf16.msra.mxu0 %v178
    %225 = vmatpush.bf16.msra.mxu0 %v176
    %226 = vmatpush.bf16.msra.mxu0 %v174
    %227 = vmatmul.bf16.gmra.mxu0 %v123
    %v228 = vpop.f32.mrf.mxu0
    %v229 = vadd.f32 %v116, %v228
    %v230 = vpop.f32.mrf.mxu0
    %v231 = vadd.f32 %v116, %v230
    %232 = vdwg.mxu0
    %v233 = vmax.f32 %v215, 0.0
    %v234 = vmax.f32 %v229, 0.0
    %v235 = vmax.f32 %v217, 0.0
    %v236 = vmax.f32 %v231, 0.0
    %v237 = vld [vmem:[#allocation4] sm:$0xf]
    %v238 = vld [vmem:[#allocation4 + $0x4] sm:$0xf]
    %v239 = vld [vmem:[#allocation4 + $0x8] sm:$0xf]
    %v240 = vld [vmem:[#allocation4 + $0xc] sm:$0xf]
    %v241 = vld [vmem:[#allocation4 + $0x10] sm:$0xf]
    %v242 = vld [vmem:[#allocation4 + $0x14] sm:$0xf]
    %v243 = vld [vmem:[#allocation4 + $0x18] sm:$0xf]
    %v244 = vld [vmem:[#allocation4 + $0x1c] sm:$0xf]
    %v245 = vld [vmem:[#allocation4 + $0x20] sm:$0xf]
    %v246 = vld [vmem:[#allocation4 + $0x24] sm:$0xf]
    %v247 = vld [vmem:[#allocation4 + $0x28] sm:$0xf]
    %v248 = vld [vmem:[#allocation4 + $0x2c] sm:$0xf]
    %v249 = vld [vmem:[#allocation4 + $0x30] sm:$0xf]
    %v250 = vld [vmem:[#allocation4 + $0x34] sm:$0xf]
    %v251 = vld [vmem:[#allocation4 + $0x38] sm:$0xf]
    %v252 = vld [vmem:[#allocation4 + $0x3c] sm:$0xf]
    %v253 = vld [vmem:[%s4] sm:$0x1]
    %v254 = vpack.c.bf16 %v235, %v233
    %v256 = vperm.slane %v253, 0
    %v274 = vunpack.c.l.b16 %v237
    %v275 = vunpack.c.l.b16 %v238
    %v276 = vunpack.c.l.b16 %v239
    %v277 = vunpack.c.l.b16 %v240
    %v278 = vunpack.c.l.b16 %v241
    %v279 = vunpack.c.l.b16 %v242
    %v280 = vunpack.c.l.b16 %v243
    %v281 = vunpack.c.l.b16 %v244
    %v282 = vunpack.c.l.b16 %v245
    %v283 = vunpack.c.l.b16 %v246
    %v284 = vunpack.c.l.b16 %v247
    %v285 = vunpack.c.l.b16 %v248
    %v286 = vunpack.c.l.b16 %v249
    %v287 = vunpack.c.l.b16 %v250
    %v288 = vunpack.c.l.b16 %v251
    %v289 = vunpack.c.l.b16 %v252
    %v290 = vpack.c.b16 %v275, %v274
    %v291 = vpack.c.b16 %v277, %v276
    %v292 = vpack.c.b16 %v279, %v278
    %v293 = vpack.c.b16 %v281, %v280
    %v294 = vpack.c.b16 %v283, %v282
    %v295 = vpack.c.b16 %v285, %v284
    %v296 = vpack.c.b16 %v287, %v286
    %v297 = vpack.c.b16 %v289, %v288
    %306 = vmatpush.bf16.msra.mxu0 %v297
    %307 = vmatpush.bf16.msra.mxu0 %v296
    %308 = vmatpush.bf16.msra.mxu0 %v295
    %309 = vmatpush.bf16.msra.mxu0 %v294
    %310 = vmatpush.bf16.msra.mxu0 %v293
    %311 = vmatpush.bf16.msra.mxu0 %v292
    %312 = vmatpush.bf16.msra.mxu0 %v291
    %313 = vmatpush.bf16.msra.mxu0 %v290
    %314 = vmatmul.bf16.gmra.mxu0 %v254
    %v315 = vpop.f32.mrf.mxu0
    %v316 = vadd.f32 %v256, %v315
    %v317 = vpop.f32.mrf.mxu0
    %v318 = vadd.f32 %v256, %v317
    %319 = vdwg.mxu0
    %v320 = vmax.f32 %v316, 0.0
    %v321 = vmax.f32 %v318, 0.0
    %v322 = vld [vmem:[#allocation6] sm:$0xf]
    %v323 = vld [vmem:[#allocation6 + $0x4] sm:$0xf]
    %v324 = vld [vmem:[#allocation6 + $0x8] sm:$0xf]
    %v325 = vld [vmem:[#allocation6 + $0xc] sm:$0xf]
    %v326 = vld [vmem:[#allocation6 + $0x10] sm:$0xf]
    %v327 = vld [vmem:[#allocation6 + $0x14] sm:$0xf]
    %v328 = vld [vmem:[#allocation6 + $0x18] sm:$0xf]
    %v329 = vld [vmem:[#allocation6 + $0x1c] sm:$0xf]
    %v330 = vld [vmem:[#allocation6 + $0x20] sm:$0xf]
    %v331 = vld [vmem:[#allocation6 + $0x24] sm:$0xf]
    %v332 = vld [vmem:[#allocation6 + $0x28] sm:$0xf]
    %v333 = vld [vmem:[#allocation6 + $0x2c] sm:$0xf]
    %v334 = vld [vmem:[#allocation6 + $0x30] sm:$0xf]
    %v335 = vld [vmem:[#allocation6 + $0x34] sm:$0xf]
    %v336 = vld [vmem:[#allocation6 + $0x38] sm:$0xf]
    %v337 = vld [vmem:[#allocation6 + $0x3c] sm:$0xf]
    %v338 = vld [vmem:[%s6] sm:$0x1]
    %v339 = vpack.c.bf16 %v321, %v320
    %v341 = vperm.slane %v338, 0
    %v359 = vunpack.c.l.b16 %v322
    %v360 = vunpack.c.l.b16 %v323
    %v361 = vunpack.c.l.b16 %v324
    %v362 = vunpack.c.l.b16 %v325
    %v363 = vunpack.c.l.b16 %v326
    %v364 = vunpack.c.l.b16 %v327
    %v365 = vunpack.c.l.b16 %v328
    %v366 = vunpack.c.l.b16 %v329
    %v367 = vunpack.c.l.b16 %v330
    %v368 = vunpack.c.l.b16 %v331
    %v369 = vunpack.c.l.b16 %v332
    %v370 = vunpack.c.l.b16 %v333
    %v371 = vunpack.c.l.b16 %v334
    %v372 = vunpack.c.l.b16 %v335
    %v373 = vunpack.c.l.b16 %v336
    %v374 = vunpack.c.l.b16 %v337
    %v375 = vpack.c.b16 %v360, %v359
    %v376 = vpack.c.b16 %v362, %v361
    %v377 = vpack.c.b16 %v364, %v363
    %v378 = vpack.c.b16 %v366, %v365
    %v379 = vpack.c.b16 %v368, %v367
    %v380 = vpack.c.b16 %v370, %v369
    %v381 = vpack.c.b16 %v372, %v371
    %v382 = vpack.c.b16 %v374, %v373
    %391 = vmatpush.bf16.msra.mxu0 %v382
    %392 = vmatpush.bf16.msra.mxu0 %v381
    %393 = vmatpush.bf16.msra.mxu0 %v380
    %394 = vmatpush.bf16.msra.mxu0 %v379
    %395 = vmatpush.bf16.msra.mxu0 %v378
    %396 = vmatpush.bf16.msra.mxu0 %v377
    %397 = vmatpush.bf16.msra.mxu0 %v376
    %398 = vmatpush.bf16.msra.mxu0 %v375
    %399 = vmatmul.bf16.gmra.mxu0 %v339
    %v400 = vpop.f32.mrf.mxu0
    %v401 = vadd.f32 %v341, %v400
    %v402 = vpop.f32.mrf.mxu0
    %v403 = vadd.f32 %v341, %v402
    %404 = vdwg.mxu0
    %405 = vst [vmem:[%s9] sm:$0xff] %v401
    %406 = vst [vmem:[%s9 + $0x10] sm:$0xff] %v403
    %v407 = vld [vmem:[#allocation7] sm:$0xf]
    %v408 = vld [vmem:[#allocation7 + $0x4] sm:$0xf]
    %v409 = vld [vmem:[#allocation7 + $0x8] sm:$0xf]
    %v410 = vld [vmem:[#allocation7 + $0xc] sm:$0xf]
    %v411 = vld [vmem:[#allocation7 + $0x10] sm:$0xf]
    %v412 = vld [vmem:[#allocation7 + $0x14] sm:$0xf]
    %v413 = vld [vmem:[#allocation7 + $0x18] sm:$0xf]
    %v414 = vld [vmem:[#allocation7 + $0x1c] sm:$0xf]
    %v415 = vld [vmem:[#allocation7 + $0x20] sm:$0xf]
    %v416 = vld [vmem:[#allocation7 + $0x24] sm:$0xf]
    %v417 = vld [vmem:[#allocation7 + $0x28] sm:$0xf]
    %v418 = vld [vmem:[#allocation7 + $0x2c] sm:$0xf]
    %v419 = vld [vmem:[#allocation7 + $0x30] sm:$0xf]
    %v420 = vld [vmem:[#allocation7 + $0x34] sm:$0xf]
    %v421 = vld [vmem:[#allocation7 + $0x38] sm:$0xf]
    %v422 = vld [vmem:[#allocation7 + $0x3c] sm:$0xf]
    %v423 = vld [vmem:[%s8] sm:$0x1]
    %v424 = vpack.c.bf16 %v236, %v234
    %v426 = vperm.slane %v423, 0
    %v444 = vunpack.c.l.b16 %v407
    %v445 = vunpack.c.l.b16 %v408
    %v446 = vunpack.c.l.b16 %v409
    %v447 = vunpack.c.l.b16 %v410
    %v448 = vunpack.c.l.b16 %v411
    %v449 = vunpack.c.l.b16 %v412
    %v450 = vunpack.c.l.b16 %v413
    %v451 = vunpack.c.l.b16 %v414
    %v452 = vunpack.c.l.b16 %v415
    %v453 = vunpack.c.l.b16 %v416
    %v454 = vunpack.c.l.b16 %v417
    %v455 = vunpack.c.l.b16 %v418
    %v456 = vunpack.c.l.b16 %v419
    %v457 = vunpack.c.l.b16 %v420
    %v458 = vunpack.c.l.b16 %v421
    %v459 = vunpack.c.l.b16 %v422
    %v460 = vpack.c.b16 %v445, %v444
    %v461 = vpack.c.b16 %v447, %v446
    %v462 = vpack.c.b16 %v449, %v448
    %v463 = vpack.c.b16 %v451, %v450
    %v464 = vpack.c.b16 %v453, %v452
    %v465 = vpack.c.b16 %v455, %v454
    %v466 = vpack.c.b16 %v457, %v456
    %v467 = vpack.c.b16 %v459, %v458
    %476 = vmatpush.bf16.msra.mxu0 %v467
    %477 = vmatpush.bf16.msra.mxu0 %v466
    %478 = vmatpush.bf16.msra.mxu0 %v465
    %479 = vmatpush.bf16.msra.mxu0 %v464
    %480 = vmatpush.bf16.msra.mxu0 %v463
    %481 = vmatpush.bf16.msra.mxu0 %v462
    %482 = vmatpush.bf16.msra.mxu0 %v461
    %483 = vmatpush.bf16.msra.mxu0 %v460
    %484 = vmatmul.bf16.gmra.mxu0 %v424
    %v485 = vpop.f32.mrf.mxu0
    %v486 = vadd.f32 %v426, %v485
    %v487 = vpop.f32.mrf.mxu0
    %v488 = vadd.f32 %v426, %v487
    %489 = vdwg.mxu0
    %490 = vst [vmem:[%s9 + $0x8] sm:$0xff] %v486
    %491 = vst [vmem:[%s9 + $0x18] sm:$0xff] %v488
    // Predicated region
    $region54: #{forward.1} parent=1 // pred_check
      _
    $region55: #{forward.1} parent=1 // pred_check_branch
      %493 = sbr.rel (0) target = $region57
    $region56: #{forward.1} parent=1 // pred_region
      _
    $region57: #{forward.1} parent=1 // pred_fallthru
      _
    // Predicated region
    $region58: #{forward.1} parent=1 // pred_check
      _
    $region59: #{forward.1} parent=1 // pred_check_branch
      %495 = sbr.rel (0) target = $region61
    $region60: #{forward.1} parent=1 // pred_region
      _
    $region61: #{forward.1} parent=1 // pred_fallthru
      _
    %496 = vsyncpa [#allocation3], 1
    %497 = vsyncpa [#allocation5], 1
    %498 = vsyncpa [#allocation8], 1

</llo_original>
